<compile_context>
chip_gen: v7x
topology: tpu7x:2x2x1
jax: 0.10.0
libtpu: 0.0.40
codegen_flags: <defaults>
</compile_context>

<pallas_src>
import jax
import jax.numpy as jnp
from jax.experimental import pallas as pl
from jax.experimental.pallas import tpu as pltpu


# ----------------------------- Pallas kernel -------------------------------
def _decoder_mlp_kernel(x_ref, w1_ref, w23_ref, w4_ref, b123_ref, b4_ref, o_ref):
    """Full color-MLP hot path: 4 matmuls + 3 ReLU + sigmoid, all in VMEM.

    x_ref    : [tile_n, in_ch]  z tile, untransposed (straight HBM read)
    w1_ref   : [F, in_ch]
    w23_ref  : [2F, F]          (w2 stacked over w3)
    w4_ref   : [3, F]
    b123_ref : [F, 3]           (b1 | b2 | b3 as columns)
    b4_ref   : [3, 1]
    o_ref    : [3, tile_n]      lane-dense output

    NOTE: HBM/overhead bound.  Do not pad output rows or chase MXU shape
    efficiency (K=8/32, M=32/3 vs the 128/256 array) -- irrelevant here.
    """
    F = w1_ref.shape[0]

    # Cast first (v5e VPU/EUP have no bf16), then flip batch onto lanes with
    # one in-kernel transpose (XLU slot).  Replaces the old wrapper `z.T`.
    x = x_ref[...].astype(jnp.float32).T                        # [in_ch, tile_n]

    b123 = b123_ref[...]                                        # [F, 3]

    h = jnp.dot(w1_ref[...], x, preferred_element_type=jnp.float32) + b123[:, 0:1]
    h = jnp.maximum(h, 0.0)

    h = jnp.dot(w23_ref[0:F, :], h, preferred_element_type=jnp.float32) + b123[:, 1:2]
    h = jnp.maximum(h, 0.0)

    h = jnp.dot(w23_ref[F:2 * F, :], h, preferred_element_type=jnp.float32) + b123[:, 2:3]
    h = jnp.maximum(h, 0.0)

    out = jnp.dot(w4_ref[...], h, preferred_element_type=jnp.float32) + b4_ref[...]
    o_ref[...] = jax.nn.sigmoid(out).astype(o_ref.dtype)


# ------------------------------ Wrapper -------------------------------------
def decoder_forward(z_color, params, *, tile_n=4096, channels_last=True):
    """z_color: [N, in_ch] float32 or bfloat16.  params: [out,in] weights, [out,1] biases.

    Returns [N, 3] (PyTorch layout).  Pass channels_last=False to get the
    kernel-native [3, N] and skip the final small transpose.
    """
    N, in_ch = z_color.shape
    w1, b1 = params["w1"], params["b1"]          # [F, in_ch], [F, 1]
    w2, b2 = params["w2"], params["b2"]          # [F, F],     [F, 1]
    w3, b3 = params["w3"], params["b3"]          # [F, F],     [F, 1]
    w4, b4 = params["w4"], params["b4"]          # [3, F],     [3, 1]
    F = w1.shape[0]

    # Pack constants: fewer DMA descriptors / resident buffers (each tiny
    # [F,1] block otherwise pads to a full (8,128) VMEM tile anyway).
    w23 = jnp.concatenate([w2, w3], axis=0)      # [2F, F]
    b123 = jnp.concatenate([b1, b2, b3], axis=1)  # [F, 3]

    # ---- tile selection -----------------------------------------------------
    # Large lane-dense tiles amortize the ~0.35us per-grid-step overhead; the
    # ragged tail is handled by Pallas boundary-block masking (no jnp.pad HBM
    # round trip).  Keep >= 2 grid steps when the batch allows it so the
    # "parallel" axis can split across v7x's two TensorCores.  tile_n is always
    # a multiple of 128 so output stores stay unmasked lane-dense vst.
    n128 = ((N + 127) // 128) * 128
    tile_n = max(128, min(int(tile_n), n128))
    tile_n = (tile_n // 128) * 128
    if pl.cdiv(N, tile_n) < 2 and n128 >= 256:
        tile_n = ((n128 // 2 + 127) // 128) * 128
    n_tiles = pl.cdiv(N, tile_n)

    const = lambda i: (0, 0)                     # resident weights/biases
    resident = dict(pipeline_mode=pl.Buffered(1))

    itemsize = jnp.dtype(z_color.dtype).itemsize
    weight_bytes = 4 * (w1.size + w23.size + w4.size + b123.size + b4.size)
    cost = pl.CostEstimate(
        flops=int(2 * N * (in_ch * F + 2 * F * F + 3 * F) + 4 * N * F),
        transcendentals=int(3 * N),
        bytes_accessed=int(N * in_ch * itemsize + 3 * N * itemsize + weight_bytes),
    )

    out = pl.pallas_call(
        _decoder_mlp_kernel,
        out_shape=jax.ShapeDtypeStruct((3, N), z_color.dtype),
        grid_spec=pltpu.PrefetchScalarGridSpec(
            num_scalar_prefetch=0,
            grid=(n_tiles,),
            in_specs=[
                pl.BlockSpec((tile_n, in_ch), lambda i: (i, 0)),   # z, untransposed
                pl.BlockSpec((F, in_ch), const, **resident),
                pl.BlockSpec((2 * F, F), const, **resident),
                pl.BlockSpec((3, F), const, **resident),
                pl.BlockSpec((F, 3), const, **resident),
                pl.BlockSpec((3, 1), const, **resident),
            ],
            out_specs=pl.BlockSpec((3, tile_n), lambda i: (0, i)),  # lane-dense
        ),
        compiler_params=pltpu.CompilerParams(
            dimension_semantics=("parallel",),
            vmem_limit_bytes=32 * 1024 * 1024),
        cost_estimate=cost,
    )(z_color, w1, w23, w4, b123, b4)

    if channels_last:
        # PyTorch layout [N, 3]; this small 3xN transpose is the only work left
        # outside the kernel (~12 B/elem of the ~44 B/elem streamed).
        return out.T
    return out


# ----------------------- deterministic parameter init -----------------------
def _weight_norm_effective(v, g):
    """PyTorch nn.utils.weight_norm on Linear: W = g * v / ||v||, norm over dim=1."""
    norm = jnp.sqrt(jnp.sum(v * v, axis=1, keepdims=True))  # [out, 1]
    return v * (g[:, None] / norm)


def make_params(key, in_ch, feat_ch):
    ks = jax.random.split(key, 12)

    def lin(kw, kb, fan_in, fan_out):
        bound = 1.0 / jnp.sqrt(fan_in)
        w = jax.random.uniform(kw, (fan_out, fan_in), jnp.float32, -bound, bound)
        b = jax.random.uniform(kb, (fan_out,), jnp.float32, -bound, bound)
        return w, b

    # Three weight-normalized layers (v, g, b), one plain final layer.
    v1, b1 = lin(ks[0], ks[1], in_ch, feat_ch)
    g1 = jnp.sqrt(jnp.sum(v1 * v1, axis=1))  # weight_norm init: g = ||v||
    v2, b2 = lin(ks[2], ks[3], feat_ch, feat_ch)
    g2 = jnp.sqrt(jnp.sum(v2 * v2, axis=1))
    v3, b3 = lin(ks[4], ks[5], feat_ch, feat_ch)
    g3 = jnp.sqrt(jnp.sum(v3 * v3, axis=1))
    w4, b4 = lin(ks[6], ks[7], feat_ch, 3)

    # Perturb g a bit so weight-norm is not a no-op (still deterministic).
    g1 = g1 * (1.0 + 0.1 * jax.random.normal(ks[8], g1.shape))
    g2 = g2 * (1.0 + 0.1 * jax.random.normal(ks[9], g2.shape))
    g3 = g3 * (1.0 + 0.1 * jax.random.normal(ks[10], g3.shape))

    w1 = _weight_norm_effective(v1, g1)
    w2 = _weight_norm_effective(v2, g2)
    w3 = _weight_norm_effective(v3, g3)

    # PyTorch [out, in] orientation; biases as [out, 1] columns (broadcast on lanes).
    return {
        "w1": w1, "b1": b1[:, None],
        "w2": w2, "b2": b2[:, None],
        "w3": w3, "b3": b3[:, None],
        "w4": w4, "b4": b4[:, None],
    }


# ------------------------------ reference ----------------------------------
def decoder_reference(z, p):
    h = jnp.maximum(z @ p["w1"].T + p["b1"][:, 0], 0.0)
    h = jnp.maximum(h @ p["w2"].T + p["b2"][:, 0], 0.0)
    h = jnp.maximum(h @ p["w3"].T + p["b3"][:, 0], 0.0)
    return jax.nn.sigmoid(h @ p["w4"].T + p["b4"][:, 0])


if __name__ == "__main__":
    key = jax.random.PRNGKey(0)
    k_param, k_in, k_in2 = jax.random.split(key, 3)

    in_ch = 8      # cfg.color_in_ch
    feat_ch = 32   # cfg.hidden_ch

    params = make_params(k_param, in_ch, feat_ch)

    # (a) N=256: tile clamp keeps >= 2 grid steps (both v7x TensorCores busy).
    N = 256
    z = jax.random.normal(k_in, (N, in_ch), jnp.float32)
    out = jax.block_until_ready(decoder_forward(z, params))
    ref = decoder_reference(z, params)
    assert out.shape == (N, 3)
    assert jnp.max(jnp.abs(out - ref)) < 1e-5

    # (b) Ragged batch (N not a multiple of 128): exercises Pallas boundary-block
    #     masking -- no wrapper-side pad, tail garbage never written back.
    N2 = 100
    z2 = jax.random.normal(k_in2, (N2, in_ch), jnp.float32)
    out2 = jax.block_until_ready(decoder_forward(z2, params))
    ref2 = decoder_reference(z2, params)
    assert out2.shape == (N2, 3)
    assert jnp.max(jnp.abs(out2 - ref2)) < 1e-5

    # (c) bf16 I/O path (halves streamed HBM bytes on v6e/v7x); math stays f32
    #     inside the kernel, so only the I/O quantization shows up.
    z3 = z.astype(jnp.bfloat16)
    out3 = jax.block_until_ready(decoder_forward(z3, params))
    ref3 = decoder_reference(z3.astype(jnp.float32), params)
    assert out3.dtype == jnp.bfloat16
    assert jnp.max(jnp.abs(out3.astype(jnp.float32) - ref3)) < 1e-2

    print("KERNEL_OK")
</pallas_src>

<mosaic_0001>
module attributes {stable_mosaic.version = 11 : i64} {
  func.func @_decoder_mlp_kernel(%arg0: i32, %arg1: memref<128x8xf32, #tpu.memory_space<vmem>>, %arg2: memref<32x8xf32, #tpu.memory_space<vmem>>, %arg3: memref<64x32xf32, #tpu.memory_space<vmem>>, %arg4: memref<3x32xf32, #tpu.memory_space<vmem>>, %arg5: memref<32x3xf32, #tpu.memory_space<vmem>>, %arg6: memref<3x1xf32, #tpu.memory_space<vmem>>, %arg7: memref<3x128xf32, #tpu.memory_space<vmem>>) attributes {dimension_semantics = [#tpu.dimension_semantics<parallel>], iteration_bounds = array<i64: 2>, scalar_prefetch = 0 : i64, scratch_operands = 0 : i64, tpu.core_type = #tpu.core_type<tc>, window_params = [{transform_indices = @transform_0, window_bounds = array<i64: 128, 8>}, {pipeline_mode = #tpu.pipeline_mode<synchronous>, transform_indices = @transform_1, window_bounds = array<i64: 32, 8>}, {pipeline_mode = #tpu.pipeline_mode<synchronous>, transform_indices = @transform_2, window_bounds = array<i64: 64, 32>}, {pipeline_mode = #tpu.pipeline_mode<synchronous>, transform_indices = @transform_3, window_bounds = array<i64: 3, 32>}, {pipeline_mode = #tpu.pipeline_mode<synchronous>, transform_indices = @transform_4, window_bounds = array<i64: 32, 3>}, {pipeline_mode = #tpu.pipeline_mode<synchronous>, transform_indices = @transform_5, window_bounds = array<i64: 3, 1>}, {transform_indices = @transform_6, window_bounds = array<i64: 3, 128>}]} {
    %c0 = arith.constant 0 : index
    %c0_0 = arith.constant 0 : index
    %0 = vector.load %arg1[%c0, %c0_0] : memref<128x8xf32, #tpu.memory_space<vmem>>, vector<128x8xf32>
    %1 = tpu.transpose %0, [1, 0] : vector<128x8xf32> -> vector<8x128xf32>
    %c0_1 = arith.constant 0 : index
    %c0_2 = arith.constant 0 : index
    %2 = vector.load %arg5[%c0_1, %c0_2] : memref<32x3xf32, #tpu.memory_space<vmem>>, vector<32x3xf32>
    %c0_3 = arith.constant 0 : index
    %c0_4 = arith.constant 0 : index
    %3 = vector.load %arg2[%c0_3, %c0_4] : memref<32x8xf32, #tpu.memory_space<vmem>>, vector<32x8xf32>
    %cst = arith.constant dense<0.000000e+00> : vector<32x128xf32>
    %4 = tpu.matmul %3, %1, %cst {dimension_numbers = #tpu.dot_dimension_numbers<[1], [0], [0], [1], [0, 0, 1, 1], [], []>} : vector<32x8xf32>, vector<8x128xf32>, vector<32x128xf32> -> vector<32x128xf32>
    %5 = vector.extract_strided_slice %2 {offsets = [0, 0], sizes = [32, 1], strides = [1, 1]} : vector<32x3xf32> to vector<32x1xf32>
    %6 = vector.broadcast %5 : vector<32x1xf32> to vector<32x128xf32>
    %7 = arith.addf %4, %6 : vector<32x128xf32>
    %cst_5 = arith.constant 0.000000e+00 : f32
    %8 = vector.broadcast %cst_5 : f32 to vector<32x128xf32>
    %9 = arith.maximumf %7, %8 : vector<32x128xf32>
    %c0_6 = arith.constant 0 : index
    %c0_7 = arith.constant 0 : index
    %10 = vector.load %arg3[%c0_6, %c0_7] : memref<64x32xf32, #tpu.memory_space<vmem>>, vector<32x32xf32>
    %cst_8 = arith.constant dense<0.000000e+00> : vector<32x128xf32>
    %11 = tpu.matmul %10, %9, %cst_8 {dimension_numbers = #tpu.dot_dimension_numbers<[1], [0], [0], [1], [0, 0, 1, 1], [], []>} : vector<32x32xf32>, vector<32x128xf32>, vector<32x128xf32> -> vector<32x128xf32>
    %12 = vector.extract_strided_slice %2 {offsets = [0, 1], sizes = [32, 1], strides = [1, 1]} : vector<32x3xf32> to vector<32x1xf32>
    %13 = vector.broadcast %12 : vector<32x1xf32> to vector<32x128xf32>
    %14 = arith.addf %11, %13 : vector<32x128xf32>
    %cst_9 = arith.constant 0.000000e+00 : f32
    %15 = vector.broadcast %cst_9 : f32 to vector<32x128xf32>
    %16 = arith.maximumf %14, %15 : vector<32x128xf32>
    %c32 = arith.constant 32 : index
    %c0_10 = arith.constant 0 : index
    %17 = vector.load %arg3[%c32, %c0_10] : memref<64x32xf32, #tpu.memory_space<vmem>>, vector<32x32xf32>
    %cst_11 = arith.constant dense<0.000000e+00> : vector<32x128xf32>
    %18 = tpu.matmul %17, %16, %cst_11 {dimension_numbers = #tpu.dot_dimension_numbers<[1], [0], [0], [1], [0, 0, 1, 1], [], []>} : vector<32x32xf32>, vector<32x128xf32>, vector<32x128xf32> -> vector<32x128xf32>
    %19 = vector.extract_strided_slice %2 {offsets = [0, 2], sizes = [32, 1], strides = [1, 1]} : vector<32x3xf32> to vector<32x1xf32>
    %20 = vector.broadcast %19 : vector<32x1xf32> to vector<32x128xf32>
    %21 = arith.addf %18, %20 : vector<32x128xf32>
    %cst_12 = arith.constant 0.000000e+00 : f32
    %22 = vector.broadcast %cst_12 : f32 to vector<32x128xf32>
    %23 = arith.maximumf %21, %22 : vector<32x128xf32>
    %c0_13 = arith.constant 0 : index
    %c0_14 = arith.constant 0 : index
    %24 = vector.load %arg4[%c0_13, %c0_14] : memref<3x32xf32, #tpu.memory_space<vmem>>, vector<3x32xf32>
    %cst_15 = arith.constant dense<0.000000e+00> : vector<3x128xf32>
    %25 = tpu.matmul %24, %23, %cst_15 {dimension_numbers = #tpu.dot_dimension_numbers<[1], [0], [0], [1], [0, 0, 1, 1], [], []>} : vector<3x32xf32>, vector<32x128xf32>, vector<3x128xf32> -> vector<3x128xf32>
    %c0_16 = arith.constant 0 : index
    %c0_17 = arith.constant 0 : index
    %26 = vector.load %arg6[%c0_16, %c0_17] : memref<3x1xf32, #tpu.memory_space<vmem>>, vector<3x1xf32>
    %27 = vector.broadcast %26 : vector<3x1xf32> to vector<3x128xf32>
    %28 = arith.addf %25, %27 : vector<3x128xf32>
    %29 = arith.negf %28 : vector<3x128xf32>
    %30 = math.exp %29 : vector<3x128xf32>
    %cst_18 = arith.constant 1.000000e+00 : f32
    %31 = vector.broadcast %cst_18 : f32 to vector<3x128xf32>
    %32 = arith.addf %31, %30 : vector<3x128xf32>
    %33 = arith.divf %31, %32 : vector<3x128xf32>
    %c0_19 = arith.constant 0 : index
    %c0_20 = arith.constant 0 : index
    %34 = vector.load %arg7[%c0_19, %c0_20] : memref<3x128xf32, #tpu.memory_space<vmem>>, vector<3x128xf32>
    tpu.vector_store %arg7[%c0_19, %c0_20], %33 {strides = array<i32>} : memref<3x128xf32, #tpu.memory_space<vmem>>, vector<3x128xf32>,
    return
  }
  func.func @transform_0(%arg0: i32) -> (i32, i32) {
    %c0_i32 = arith.constant 0 : i32
    %c0_i32_0 = arith.constant 0 : i32
    return %arg0, %c0_i32 : i32, i32
  }
  func.func @transform_1(%arg0: i32) -> (i32, i32) {
    %c0_i32 = arith.constant 0 : i32
    %c0_i32_0 = arith.constant 0 : i32
    %c0_i32_1 = arith.constant 0 : i32
    return %c0_i32, %c0_i32_0 : i32, i32
  }
  func.func @transform_2(%arg0: i32) -> (i32, i32) {
    %c0_i32 = arith.constant 0 : i32
    %c0_i32_0 = arith.constant 0 : i32
    %c0_i32_1 = arith.constant 0 : i32
    return %c0_i32, %c0_i32_0 : i32, i32
  }
  func.func @transform_3(%arg0: i32) -> (i32, i32) {
    %c0_i32 = arith.constant 0 : i32
    %c0_i32_0 = arith.constant 0 : i32
    %c0_i32_1 = arith.constant 0 : i32
    return %c0_i32, %c0_i32_0 : i32, i32
  }
  func.func @transform_4(%arg0: i32) -> (i32, i32) {
    %c0_i32 = arith.constant 0 : i32
    %c0_i32_0 = arith.constant 0 : i32
    %c0_i32_1 = arith.constant 0 : i32
    return %c0_i32, %c0_i32_0 : i32, i32
  }
  func.func @transform_5(%arg0: i32) -> (i32, i32) {
    %c0_i32 = arith.constant 0 : i32
    %c0_i32_0 = arith.constant 0 : i32
    %c0_i32_1 = arith.constant 0 : i32
    return %c0_i32, %c0_i32_0 : i32, i32
  }
  func.func @transform_6(%arg0: i32) -> (i32, i32) {
    %c0_i32 = arith.constant 0 : i32
    %c0_i32_0 = arith.constant 0 : i32
    return %c0_i32, %arg0 : i32, i32
  }
}

</mosaic_0001>

<llo_original>
// kernel: tpu_custom_call.1
$region0: #{tpu_custom_call.1}
  #allocation0 [shape = 'u32[]', space=smem, size = 0x4, offset = 0x4, fixed_abs, tag = 'smem constant byte address 0x4 - core index']
  #allocation1 [shape = 'u32[144,128]{1,0:T(1,128)}', space=vmem, size = 0x12000, scoped, tag = 'internal scratch']
  %s0 = inlined_call_operand.vmem [shape: f32[256,8], index: 0, kind: input, shape index: {}]
  %s1 = inlined_call_operand.vmem [shape: f32[32,8], index: 1, kind: input, shape index: {}]
  %s2 = inlined_call_operand.vmem [shape: f32[64,32], index: 2, kind: input, shape index: {}]
  %s3 = inlined_call_operand.vmem [shape: f32[3,32], index: 3, kind: input, shape index: {}]
  %s4 = inlined_call_operand.vmem [shape: f32[32,3], index: 4, kind: input, shape index: {}]
  %s5 = inlined_call_operand.vmem [shape: f32[3,1], index: 5, kind: input, shape index: {}]
  %s6 = inlined_call_operand.hbm [shape: f32[3,256], index: 6, kind: output, shape index: {}]
  %s7 = sld [smem:[#allocation0]]
  $region57: #{tpu_custom_call.1} parent=0
    _
  %s9 = ssub.s32 1, %s7
  %s10 = scalar_select 0, %s9, %s7
  $region1: #{tpu_custom_call.1} parent=0
    #allocation2 [shape = 'u8[4096]{0}', space=vmem, size = 0x1000, scoped, tag = 'output window, operand 0']
    #allocation3 [shape = 's32[2]{0}', space=sflag, size = 0x8, scoped, tag = 'scoped memory for tpu_custom_call.1']
    %11 = vsyncpa [#allocation3], 0
    %s12 = scalar_lea.sflag [#allocation3], 1
    %13 = vsyncpa %s12, 0
    loop: start=0, step=1, limit=4
    $region2: #{tpu_custom_call.1} parent=1 // loop_pre_header
      _
    $region3: #{tpu_custom_call.1} parent=1 // loop_header
      %s15 = sphi 0, %s19
      %p16 = scmp.ge.s32.totalorder %s15, 4
      %s25 = sphi 0, %s27
      %s28 = sphi 0, %s25
      %s29 = sphi 0, %s28
      %s45 = sphi 0, %s29
      %s49 = sphi 0, %s49
      %s51 = sphi 0, %s49
      %s52 = sphi 0, %s51
      %s66 = sphi 0, %s52
      %s70 = sphi 0, %s70
      %s72 = sphi 0, %s70
      %s73 = sphi 0, %s72
      %s87 = sphi 0, %s73
      %s91 = sphi 0, %s91
      %s93 = sphi 0, %s91
      %s94 = sphi 0, %s93
      %s108 = sphi 0, %s94
      %s112 = sphi 0, %s112
      %s114 = sphi 0, %s112
      %s115 = sphi 0, %s114
      %s129 = sphi 0, %s115
      %s133 = sphi 0, %s133
      %s135 = sphi 0, %s133
      %s136 = sphi 0, %s135
      %s150 = sphi 0, %s136
      %s156 = sphi 0, %s158
      %s159 = sphi 0, %s156
      %s160 = sphi 0, %s159
      %s176 = sphi 0, %s160
    $region4: #{tpu_custom_call.1} parent=1 // loop_header_branch
      %18 = sbr.rel (%p16) target = $region8
    $region5: #{tpu_custom_call.1} parent=1 // loop_body
      %s20 = ssub.s32 %s15, 1
      %s21 = ssub.s32 %s15, 2
      %s22 = sadd.s32 %s15, 1
      %s23 = ssub.s32 %s15, %s22
      %p24 = scmp.eq.s32.totalorder %s23, 0
      %s26 = sadd.s32 %s25, 1
      %s27 = scalar_select %p24, %s25, %s26
      %p30 = pneg %p24
      %p31 = scmp.eq.s32.totalorder %s15, 1
      %p32 = por %p30, %p31
      %p33 = scmp.ne.s32.totalorder %s25, %s28
      %p34 = scmp.eq.s32.totalorder %s15, 0
      %p35 = por %p33, %p34
      %p36 = scmp.ne.s32.totalorder %s25, %s28
      %p37 = scmp.eq.s32.totalorder %s20, 1
      %p38 = por %p36, %p37
      %p39 = scmp.ne.s32.totalorder %s28, %s29
      %p40 = scmp.eq.s32.totalorder %s20, 0
      %p41 = por %p39, %p40
      %p42 = scmp.ne.s32.totalorder %s28, %s29
      %p43 = scmp.eq.s32.totalorder %s21, 1
      %p44 = por %p42, %p43
      %p46 = scmp.ne.s32.totalorder %s29, %s45
      %p47 = scmp.eq.s32.totalorder %s21, 0
      %p48 = por %p46, %p47
      %s50 = sadd.s32 %s49, 1
      %p53 = scmp.eq.s32.totalorder %s15, 1
      %p54 = scmp.ne.s32.totalorder %s49, %s51
      %p55 = scmp.eq.s32.totalorder %s15, 0
      %p56 = por %p54, %p55
      %p57 = scmp.ne.s32.totalorder %s49, %s51
      %p58 = scmp.eq.s32.totalorder %s20, 1
      %p59 = por %p57, %p58
      %p60 = scmp.ne.s32.totalorder %s51, %s52
      %p61 = scmp.eq.s32.totalorder %s20, 0
      %p62 = por %p60, %p61
      %p63 = scmp.ne.s32.totalorder %s51, %s52
      %p64 = scmp.eq.s32.totalorder %s21, 1
      %p65 = por %p63, %p64
      %p67 = scmp.ne.s32.totalorder %s52, %s66
      %p68 = scmp.eq.s32.totalorder %s21, 0
      %p69 = por %p67, %p68
      %s71 = sadd.s32 %s70, 1
      %p74 = scmp.eq.s32.totalorder %s15, 1
      %p75 = scmp.ne.s32.totalorder %s70, %s72
      %p76 = scmp.eq.s32.totalorder %s15, 0
      %p77 = por %p75, %p76
      %p78 = scmp.ne.s32.totalorder %s70, %s72
      %p79 = scmp.eq.s32.totalorder %s20, 1
      %p80 = por %p78, %p79
      %p81 = scmp.ne.s32.totalorder %s72, %s73
      %p82 = scmp.eq.s32.totalorder %s20, 0
      %p83 = por %p81, %p82
      %p84 = scmp.ne.s32.totalorder %s72, %s73
      %p85 = scmp.eq.s32.totalorder %s21, 1
      %p86 = por %p84, %p85
      %p88 = scmp.ne.s32.totalorder %s73, %s87
      %p89 = scmp.eq.s32.totalorder %s21, 0
      %p90 = por %p88, %p89
      %s92 = sadd.s32 %s91, 1
      %p95 = scmp.eq.s32.totalorder %s15, 1
      %p96 = scmp.ne.s32.totalorder %s91, %s93
      %p97 = scmp.eq.s32.totalorder %s15, 0
      %p98 = por %p96, %p97
      %p99 = scmp.ne.s32.totalorder %s91, %s93
      %p100 = scmp.eq.s32.totalorder %s20, 1
      %p101 = por %p99, %p100
      %p102 = scmp.ne.s32.totalorder %s93, %s94
      %p103 = scmp.eq.s32.totalorder %s20, 0
      %p104 = por %p102, %p103
      %p105 = scmp.ne.s32.totalorder %s93, %s94
      %p106 = scmp.eq.s32.totalorder %s21, 1
      %p107 = por %p105, %p106
      %p109 = scmp.ne.s32.totalorder %s94, %s108
      %p110 = scmp.eq.s32.totalorder %s21, 0
      %p111 = por %p109, %p110
      %s113 = sadd.s32 %s112, 1
      %p116 = scmp.eq.s32.totalorder %s15, 1
      %p117 = scmp.ne.s32.totalorder %s112, %s114
      %p118 = scmp.eq.s32.totalorder %s15, 0
      %p119 = por %p117, %p118
      %p120 = scmp.ne.s32.totalorder %s112, %s114
      %p121 = scmp.eq.s32.totalorder %s20, 1
      %p122 = por %p120, %p121
      %p123 = scmp.ne.s32.totalorder %s114, %s115
      %p124 = scmp.eq.s32.totalorder %s20, 0
      %p125 = por %p123, %p124
      %p126 = scmp.ne.s32.totalorder %s114, %s115
      %p127 = scmp.eq.s32.totalorder %s21, 1
      %p128 = por %p126, %p127
      %p130 = scmp.ne.s32.totalorder %s115, %s129
      %p131 = scmp.eq.s32.totalorder %s21, 0
      %p132 = por %p130, %p131
      %s134 = sadd.s32 %s133, 1
      %p137 = scmp.eq.s32.totalorder %s15, 1
      %p138 = scmp.ne.s32.totalorder %s133, %s135
      %p139 = scmp.eq.s32.totalorder %s15, 0
      %p140 = por %p138, %p139
      %p141 = scmp.ne.s32.totalorder %s133, %s135
      %p142 = scmp.eq.s32.totalorder %s20, 1
      %p143 = por %p141, %p142
      %p144 = scmp.ne.s32.totalorder %s135, %s136
      %p145 = scmp.eq.s32.totalorder %s20, 0
      %p146 = por %p144, %p145
      %p147 = scmp.ne.s32.totalorder %s135, %s136
      %p148 = scmp.eq.s32.totalorder %s21, 1
      %p149 = por %p147, %p148
      %p151 = scmp.ne.s32.totalorder %s136, %s150
      %p152 = scmp.eq.s32.totalorder %s21, 0
      %p153 = por %p151, %p152
      %s154 = ssub.s32 %s15, %s22
      %p155 = scmp.eq.s32.totalorder %s154, 0
      %s157 = sadd.s32 %s156, 1
      %s158 = scalar_select %p155, %s156, %s157
      %p161 = pneg %p155
      %p162 = scmp.eq.s32.totalorder %s15, 1
      %p163 = por %p161, %p162
      %p164 = scmp.ne.s32.totalorder %s156, %s159
      %p165 = scmp.eq.s32.totalorder %s15, 0
      %p166 = por %p164, %p165
      %p167 = scmp.ne.s32.totalorder %s156, %s159
      %p168 = scmp.eq.s32.totalorder %s20, 1
      %p169 = por %p167, %p168
      %p170 = scmp.ne.s32.totalorder %s159, %s160
      %p171 = scmp.eq.s32.totalorder %s20, 0
      %p172 = por %p170, %p171
      %p173 = scmp.ne.s32.totalorder %s159, %s160
      %p174 = scmp.eq.s32.totalorder %s21, 1
      %p175 = por %p173, %p174
      %p177 = scmp.ne.s32.totalorder %s160, %s176
      %p178 = scmp.eq.s32.totalorder %s21, 0
      %p179 = por %p177, %p178
      %p180 = scmp.le.s32.totalorder 1, %s15
      %p181 = scmp.lt.s32.totalorder %s15, 3
      %p182 = pnand %p180, %p181
      %p183 = pneg %p182
      // Predicated region
      $region9: #{tpu_custom_call.1} parent=5 // pred_check
        _
      $region10: #{tpu_custom_call.1} parent=5 // pred_check_branch
        %185 = sbr.rel (%p182) target = $region12
      $region11: #{tpu_custom_call.1} parent=5 // pred_region
        %s186 = ssub.s32 %s15, 1
        // Predicated region
        $region13: #{tpu_custom_call.1} parent=11 // pred_check
          %p187 = pneg %p62
        $region14: #{tpu_custom_call.1} parent=11 // pred_check_branch
          %189 = sbr.rel (%p187) target = $region16
        $region15: #{tpu_custom_call.1} parent=11 // pred_region
          _
        $region16: #{tpu_custom_call.1} parent=11 // pred_fallthru
          _
        // Predicated region
        $region17: #{tpu_custom_call.1} parent=11 // pred_check
          %p190 = pneg %p83
        $region18: #{tpu_custom_call.1} parent=11 // pred_check_branch
          %192 = sbr.rel (%p190) target = $region20
        $region19: #{tpu_custom_call.1} parent=11 // pred_region
          _
        $region20: #{tpu_custom_call.1} parent=11 // pred_fallthru
          _
        // Predicated region
        $region21: #{tpu_custom_call.1} parent=11 // pred_check
          %p193 = pneg %p104
        $region22: #{tpu_custom_call.1} parent=11 // pred_check_branch
          %195 = sbr.rel (%p193) target = $region24
        $region23: #{tpu_custom_call.1} parent=11 // pred_region
          _
        $region24: #{tpu_custom_call.1} parent=11 // pred_fallthru
          _
        // Predicated region
        $region25: #{tpu_custom_call.1} parent=11 // pred_check
          %p196 = pneg %p125
        $region26: #{tpu_custom_call.1} parent=11 // pred_check_branch
          %198 = sbr.rel (%p196) target = $region28
        $region27: #{tpu_custom_call.1} parent=11 // pred_region
          _
        $region28: #{tpu_custom_call.1} parent=11 // pred_fallthru
          _
        // Predicated region
        $region29: #{tpu_custom_call.1} parent=11 // pred_check
          %p199 = pneg %p146
        $region30: #{tpu_custom_call.1} parent=11 // pred_check_branch
          %201 = sbr.rel (%p199) target = $region32
        $region31: #{tpu_custom_call.1} parent=11 // pred_region
          _
        $region32: #{tpu_custom_call.1} parent=11 // pred_fallthru
          _
      $region12: #{tpu_custom_call.1} parent=5 // pred_fallthru
        _
      %p202 = scmp.lt.s32.totalorder %s15, 2
      // Predicated region
      $region33: #{tpu_custom_call.1} parent=5 // pred_check
        %p203 = pneg %p202
      $region34: #{tpu_custom_call.1} parent=5 // pred_check_branch
        %205 = sbr.rel (%p203) target = $region36
      $region35: #{tpu_custom_call.1} parent=5 // pred_region
        // Predicated region
        $region37: #{tpu_custom_call.1} parent=35 // pred_check
          %p206 = pneg %p35
        $region38: #{tpu_custom_call.1} parent=35 // pred_check_branch
          %208 = sbr.rel (%p206) target = $region40
        $region39: #{tpu_custom_call.1} parent=35 // pred_region
          %s209 = smul.u32 16, %s15
          %p210 = scmp.lt.s32.totalorder %s209, 31
          %s211 = scalar_select %p210, %s209, 31
          %s212 = smul.addr %s211, 8
          %s213 = scalar_lea.vmem %s0, %s212
          %s214 = smul.u32 16, %s15
        $region40: #{tpu_custom_call.1} parent=35 // pred_fallthru
          _
      $region36: #{tpu_custom_call.1} parent=5 // pred_fallthru
        _
      %p215 = scmp.le.s32.totalorder 1, %s15
      %p216 = scmp.lt.s32.totalorder %s15, 3
      %p217 = pnand %p215, %p216
      %p218 = pneg %p217
      // Predicated region
      $region41: #{tpu_custom_call.1} parent=5 // pred_check
        _
      $region42: #{tpu_custom_call.1} parent=5 // pred_check_branch
        %220 = sbr.rel (%p217) target = $region44
      $region43: #{tpu_custom_call.1} parent=5 // pred_region
        %s221 = ssub.s32 %s15, 1
        %s222 = smul.u32 16, %s20
        %p223 = scmp.lt.s32.totalorder %s222, 31
        %s224 = scalar_select %p223, %s222, 31
        %s225 = smul.addr %s224, 8
        %s226 = scalar_lea.vmem %s0, %s225
        %p227 = pneg %p41
        %p228 = pneg %p38
        %p229 = pneg %p62
        %p230 = pneg %p59
        %p231 = pneg %p83
        %p232 = pneg %p80
        %p233 = pneg %p104
        %p234 = pneg %p101
        %p235 = pneg %p125
        %p236 = pneg %p122
        %p237 = pneg %p146
        %p238 = pneg %p143
        %p239 = pneg %p172
        %p240 = pneg %p169
        %s241 = sand.u32 %s159, 1
        %s242 = scalar_lea.sflag [#allocation3], %s241
        %s243 = sand.u32 %s159, 1
        %s244 = smul.addr %s243, 4
        %s245 = scalar_lea.vmem [#allocation2], %s244
        %s246 = smul.u32 16, %s20
        %p247 = scmp.lt.s32.totalorder %s246, 31
        %s248 = scalar_select %p247, %s246, 31
        %s249 = smul.addr %s248, 8
        %s250 = scalar_lea.vmem %s0, %s249
        %s251 = smul.u32 16, %s20
        %v252 = vld [vmem:[%s250] sm:$0xff]
        %v253 = vld [vmem:[%s250 + $0x8] sm:$0xff]
        %v254 = vld [vmem:[%s250 + $0x10] sm:$0xff]
        %v255 = vld [vmem:[%s250 + $0x18] sm:$0xff]
        %v256 = vld [vmem:[%s250 + $0x20] sm:$0xff]
        %v257 = vld [vmem:[%s250 + $0x28] sm:$0xff]
        %v258 = vld [vmem:[%s250 + $0x30] sm:$0xff]
        %v259 = vld [vmem:[%s250 + $0x38] sm:$0xff]
        %v260 = vld [vmem:[%s250 + $0x40] sm:$0xff]
        %v261 = vld [vmem:[%s250 + $0x48] sm:$0xff]
        %v262 = vld [vmem:[%s250 + $0x50] sm:$0xff]
        %v263 = vld [vmem:[%s250 + $0x58] sm:$0xff]
        %v264 = vld [vmem:[%s250 + $0x60] sm:$0xff]
        %v265 = vld [vmem:[%s250 + $0x68] sm:$0xff]
        %v266 = vld [vmem:[%s250 + $0x70] sm:$0xff]
        %v267 = vld [vmem:[%s250 + $0x78] sm:$0xff]
        %v268 = vld [vmem:[%s4] sm:$0xff]
        %v269 = vld [vmem:[%s4 + $0x8] sm:$0xff]
        %v270 = vld [vmem:[%s4 + $0x10] sm:$0xff]
        %v271 = vld [vmem:[%s4 + $0x18] sm:$0xff]
        %v272 = vld [vmem:[%s1] sm:$0xff]
        %v273 = vld [vmem:[%s1 + $0x8] sm:$0xff]
        %v274 = vld [vmem:[%s1 + $0x10] sm:$0xff]
        %v275 = vld [vmem:[%s1 + $0x18] sm:$0xff]
        %277 = vset.pattern.permute.xlu0 0
        %278 = vperm.xlu0 %277, %v268
        %v279 = vpop.permute.xlu0 %278
        %282 = vset.pattern.permute.xlu0 0
        %283 = vperm.xlu0 %282, %v269
        %v284 = vpop.permute.xlu0 %283
        %287 = vset.pattern.permute.xlu0 0
        %288 = vperm.xlu0 %287, %v270
        %v289 = vpop.permute.xlu0 %288
        %292 = vset.pattern.permute.xlu0 0
        %293 = vperm.xlu0 %292, %v271
        %v294 = vpop.permute.xlu0 %293
        %vm296 = vcmask 64512
        %v298 = vsel %vm296, %v272, 0
        %v301 = vsel %vm296, %v273, 0
        %v304 = vsel %vm296, %v274, 0
        %v307 = vsel %vm296, %v275, 0
        %v310 = vsel %vm296, %v252, 0
        %v313 = vsel %vm296, %v253, 0
        %v316 = vsel %vm296, %v254, 0
        %v319 = vsel %vm296, %v255, 0
        %v322 = vsel %vm296, %v256, 0
        %v325 = vsel %vm296, %v257, 0
        %v328 = vsel %vm296, %v258, 0
        %v331 = vsel %vm296, %v259, 0
        %v334 = vsel %vm296, %v260, 0
        %v337 = vsel %vm296, %v261, 0
        %v340 = vsel %vm296, %v262, 0
        %v343 = vsel %vm296, %v263, 0
        %v346 = vsel %vm296, %v264, 0
        %v349 = vsel %vm296, %v265, 0
        %v352 = vsel %vm296, %v266, 0
        %v355 = vsel %vm296, %v267, 0
        %357 = vmatprep.subr.mxu0 0.0
        %358 = vmatpush1.xpose.msra.mxu0 %v310
        %359 = vmatprep.subr.mxu0 0.0
        %360 = vmatpush1.xpose.msra.mxu0 %v313
        %361 = vmatprep.subr.mxu0 0.0
        %362 = vmatpush1.xpose.msra.mxu0 %v316
        %363 = vmatprep.subr.mxu0 0.0
        %364 = vmatpush1.xpose.msra.mxu0 %v319
        %365 = vmatprep.subr.mxu0 0.0
        %366 = vmatpush1.xpose.msra.mxu0 %v322
        %367 = vmatprep.subr.mxu0 0.0
        %368 = vmatpush1.xpose.msra.mxu0 %v325
        %369 = vmatprep.subr.mxu0 0.0
        %370 = vmatpush1.xpose.msra.mxu0 %v328
        %371 = vmatprep.subr.mxu0 0.0
        %372 = vmatpush1.xpose.msra.mxu0 %v331
        %373 = vmatprep.subr.mxu0 0.0
        %374 = vmatpush1.xpose.msra.mxu0 %v334
        %375 = vmatprep.subr.mxu0 0.0
        %376 = vmatpush1.xpose.msra.mxu0 %v337
        %377 = vmatprep.subr.mxu0 0.0
        %378 = vmatpush1.xpose.msra.mxu0 %v340
        %379 = vmatprep.subr.mxu0 0.0
        %380 = vmatpush1.xpose.msra.mxu0 %v343
        %381 = vmatprep.subr.mxu0 0.0
        %382 = vmatpush1.xpose.msra.mxu0 %v346
        %383 = vmatprep.subr.mxu0 0.0
        %384 = vmatpush1.xpose.msra.mxu0 %v349
        %385 = vmatprep.subr.mxu0 0.0
        %386 = vmatpush1.xpose.msra.mxu0 %v352
        %387 = vmatprep.subr.mxu0 0.0
        %388 = vmatpush1.xpose.msra.mxu0 %v355
        %389 = vmatprep.subr.mxu0 0.0
        %390 = vmatpush1.xpose.msra.mxu0 0.0
        %391 = vmatprep.subr.mxu0 0.0
        %392 = vmatpush1.xpose.msra.mxu0 0.0
        %393 = vmatprep.subr.mxu0 0.0
        %394 = vmatpush1.xpose.msra.mxu0 0.0
        %395 = vmatprep.subr.mxu0 0.0
        %396 = vmatpush1.xpose.msra.mxu0 0.0
        %397 = vmatprep.subr.mxu0 0.0
        %398 = vmatpush1.xpose.msra.mxu0 0.0
        %399 = vmatprep.subr.mxu0 0.0
        %400 = vmatpush1.xpose.msra.mxu0 0.0
        %401 = vmatprep.subr.mxu0 0.0
        %402 = vmatpush1.xpose.msra.mxu0 0.0
        %403 = vmatprep.subr.mxu0 0.0
        %404 = vmatpush1.xpose.msra.mxu0 0.0
        %405 = vmatprep.subr.mxu0 0.0
        %406 = vmatpush1.xpose.msra.mxu0 0.0
        %407 = vmatprep.subr.mxu0 0.0
        %408 = vmatpush1.xpose.msra.mxu0 0.0
        %409 = vmatprep.subr.mxu0 0.0
        %410 = vmatpush1.xpose.msra.mxu0 0.0
        %411 = vmatprep.subr.mxu0 0.0
        %412 = vmatpush1.xpose.msra.mxu0 0.0
        %413 = vmatprep.subr.mxu0 0.0
        %414 = vmatpush1.xpose.msra.mxu0 0.0
        %415 = vmatprep.subr.mxu0 0.0
        %416 = vmatpush1.xpose.msra.mxu0 0.0
        %417 = vmatprep.subr.mxu0 0.0
        %418 = vmatpush1.xpose.msra.mxu0 0.0
        %419 = vmatprep.subr.mxu0 0.0
        %420 = vmatpush1.xpose.msra.mxu0 0.0
        %421 = vmatprep.mubr.f32.mxu0 0.0
        %422 = vmatmul.mubr.f32.gmra.mrb[0].mxu0 %v298
        %v423 = vpop.f32.mrb[0].mxu0
        %v424 = vadd.f32 %v279, %v423
        %v425 = vpop.f32.mrb[0].mxu0
        %426 = vmatprep.mubr.f32.mxu0 0.0
        %427 = vmatmul.mubr.f32.gmra.mrb[0].mxu0 %v301
        %v428 = vpop.f32.mrb[0].mxu0
        %v429 = vadd.f32 %v284, %v428
        %v430 = vpop.f32.mrb[0].mxu0
        %431 = vmatprep.mubr.f32.mxu0 0.0
        %432 = vmatmul.mubr.f32.gmra.mrb[0].mxu0 %v304
        %v433 = vpop.f32.mrb[0].mxu0
        %v434 = vadd.f32 %v289, %v433
        %v435 = vpop.f32.mrb[0].mxu0
        %436 = vmatprep.mubr.f32.mxu0 0.0
        %437 = vmatmul.mubr.f32.gmra.mrb[0].mxu0 %v307
        %v438 = vpop.f32.mrb[0].mxu0
        %v439 = vadd.f32 %v294, %v438
        %v440 = vpop.f32.mrb[0].mxu0
        %441 = vdwg.mxu0
        %v442 = vmax.f32 %v424, 0.0
        %v443 = vmax.f32 %v429, 0.0
        %v444 = vmax.f32 %v434, 0.0
        %v445 = vmax.f32 %v439, 0.0
        %v446 = vld [vmem:[%s2] sm:$0xff]
        %v447 = vld [vmem:[%s2 + $0x8] sm:$0xff]
        %v448 = vld [vmem:[%s2 + $0x10] sm:$0xff]
        %v449 = vld [vmem:[%s2 + $0x18] sm:$0xff]
        %450 = vset.pattern.permute.xlu0 1
        %451 = vperm.xlu0 %450, %v268
        %v452 = vpop.permute.xlu0 %451
        %454 = vset.pattern.permute.xlu0 1
        %455 = vperm.xlu0 %454, %v269
        %v456 = vpop.permute.xlu0 %455
        %458 = vset.pattern.permute.xlu0 1
        %459 = vperm.xlu0 %458, %v270
        %v460 = vpop.permute.xlu0 %459
        %462 = vset.pattern.permute.xlu0 1
        %463 = vperm.xlu0 %462, %v271
        %v464 = vpop.permute.xlu0 %463
        %vm466 = vcmask 261120
        %v468 = vsel %vm466, %v446, 0
        %v471 = vsel %vm466, %v447, 0
        %v474 = vsel %vm466, %v448, 0
        %v477 = vsel %vm466, %v449, 0
        %479 = vmatprep.subr.mxu0 0.0
        %480 = vmatpush1.msra.mxu0 %v442
        %481 = vmatprep.subr.mxu0 0.0
        %482 = vmatpush1.msra.mxu0 %v443
        %483 = vmatprep.subr.mxu0 0.0
        %484 = vmatpush1.msra.mxu0 %v444
        %485 = vmatprep.subr.mxu0 0.0
        %486 = vmatpush1.msra.mxu0 %v445
        %487 = vmatprep.subr.mxu0 0.0
        %488 = vmatpush1.msra.mxu0 0.0
        %489 = vmatprep.subr.mxu0 0.0
        %490 = vmatpush1.msra.mxu0 0.0
        %491 = vmatprep.subr.mxu0 0.0
        %492 = vmatpush1.msra.mxu0 0.0
        %493 = vmatprep.subr.mxu0 0.0
        %494 = vmatpush1.msra.mxu0 0.0
        %495 = vmatprep.subr.mxu0 0.0
        %496 = vmatpush1.msra.mxu0 0.0
        %497 = vmatprep.subr.mxu0 0.0
        %498 = vmatpush1.msra.mxu0 0.0
        %499 = vmatprep.subr.mxu0 0.0
        %500 = vmatpush1.msra.mxu0 0.0
        %501 = vmatprep.subr.mxu0 0.0
        %502 = vmatpush1.msra.mxu0 0.0
        %503 = vmatprep.subr.mxu0 0.0
        %504 = vmatpush1.msra.mxu0 0.0
        %505 = vmatprep.subr.mxu0 0.0
        %506 = vmatpush1.msra.mxu0 0.0
        %507 = vmatprep.subr.mxu0 0.0
        %508 = vmatpush1.msra.mxu0 0.0
        %509 = vmatprep.subr.mxu0 0.0
        %510 = vmatpush1.msra.mxu0 0.0
        %511 = vmatprep.subr.mxu0 0.0
        %512 = vmatpush1.msra.mxu0 0.0
        %513 = vmatprep.subr.mxu0 0.0
        %514 = vmatpush1.msra.mxu0 0.0
        %515 = vmatprep.subr.mxu0 0.0
        %516 = vmatpush1.msra.mxu0 0.0
        %517 = vmatprep.subr.mxu0 0.0
        %518 = vmatpush1.msra.mxu0 0.0
        %519 = vmatprep.subr.mxu0 0.0
        %520 = vmatpush1.msra.mxu0 0.0
        %521 = vmatprep.subr.mxu0 0.0
        %522 = vmatpush1.msra.mxu0 0.0
        %523 = vmatprep.subr.mxu0 0.0
        %524 = vmatpush1.msra.mxu0 0.0
        %525 = vmatprep.subr.mxu0 0.0
        %526 = vmatpush1.msra.mxu0 0.0
        %527 = vmatprep.subr.mxu0 0.0
        %528 = vmatpush1.msra.mxu0 0.0
        %529 = vmatprep.subr.mxu0 0.0
        %530 = vmatpush1.msra.mxu0 0.0
        %531 = vmatprep.subr.mxu0 0.0
        %532 = vmatpush1.msra.mxu0 0.0
        %533 = vmatprep.subr.mxu0 0.0
        %534 = vmatpush1.msra.mxu0 0.0
        %535 = vmatprep.subr.mxu0 0.0
        %536 = vmatpush1.msra.mxu0 0.0
        %537 = vmatprep.subr.mxu0 0.0
        %538 = vmatpush1.msra.mxu0 0.0
        %539 = vmatprep.subr.mxu0 0.0
        %540 = vmatpush1.msra.mxu0 0.0
        %541 = vmatprep.subr.mxu0 0.0
        %542 = vmatpush1.msra.mxu0 0.0
        %543 = vmatprep.mubr.f32.mxu0 0.0
        %544 = vmatmul.mubr.f32.gmra.mrb[0].mxu0 %v468
        %v545 = vpop.f32.mrb[0].mxu0
        %v546 = vadd.f32 %v452, %v545
        %v547 = vpop.f32.mrb[0].mxu0
        %548 = vmatprep.mubr.f32.mxu0 0.0
        %549 = vmatmul.mubr.f32.gmra.mrb[0].mxu0 %v471
        %v550 = vpop.f32.mrb[0].mxu0
        %v551 = vadd.f32 %v456, %v550
        %v552 = vpop.f32.mrb[0].mxu0
        %553 = vmatprep.mubr.f32.mxu0 0.0
        %554 = vmatmul.mubr.f32.gmra.mrb[0].mxu0 %v474
        %v555 = vpop.f32.mrb[0].mxu0
        %v556 = vadd.f32 %v460, %v555
        %v557 = vpop.f32.mrb[0].mxu0
        %558 = vmatprep.mubr.f32.mxu0 0.0
        %559 = vmatmul.mubr.f32.gmra.mrb[0].mxu0 %v477
        %v560 = vpop.f32.mrb[0].mxu0
        %v561 = vadd.f32 %v464, %v560
        %v562 = vpop.f32.mrb[0].mxu0
        %563 = vdwg.mxu0
        %v564 = vmax.f32 %v546, 0.0
        %v565 = vmax.f32 %v551, 0.0
        %v566 = vmax.f32 %v556, 0.0
        %v567 = vmax.f32 %v561, 0.0
        %v568 = vld [vmem:[%s2 + $0x20] sm:$0xff]
        %v569 = vld [vmem:[%s2 + $0x28] sm:$0xff]
        %v570 = vld [vmem:[%s2 + $0x30] sm:$0xff]
        %v571 = vld [vmem:[%s2 + $0x38] sm:$0xff]
        %572 = vset.pattern.permute.xlu0 2
        %573 = vperm.xlu0 %572, %v268
        %v574 = vpop.permute.xlu0 %573
        %576 = vset.pattern.permute.xlu0 2
        %577 = vperm.xlu0 %576, %v269
        %v578 = vpop.permute.xlu0 %577
        %580 = vset.pattern.permute.xlu0 2
        %581 = vperm.xlu0 %580, %v270
        %v582 = vpop.permute.xlu0 %581
        %584 = vset.pattern.permute.xlu0 2
        %585 = vperm.xlu0 %584, %v271
        %v586 = vpop.permute.xlu0 %585
        %v589 = vsel %vm466, %v568, 0
        %v592 = vsel %vm466, %v569, 0
        %v595 = vsel %vm466, %v570, 0
        %v598 = vsel %vm466, %v571, 0
        %600 = vmatprep.subr.mxu0 0.0
        %601 = vmatpush1.msra.mxu0 %v564
        %602 = vmatprep.subr.mxu0 0.0
        %603 = vmatpush1.msra.mxu0 %v565
        %604 = vmatprep.subr.mxu0 0.0
        %605 = vmatpush1.msra.mxu0 %v566
        %606 = vmatprep.subr.mxu0 0.0
        %607 = vmatpush1.msra.mxu0 %v567
        %608 = vmatprep.subr.mxu0 0.0
        %609 = vmatpush1.msra.mxu0 0.0
        %610 = vmatprep.subr.mxu0 0.0
        %611 = vmatpush1.msra.mxu0 0.0
        %612 = vmatprep.subr.mxu0 0.0
        %613 = vmatpush1.msra.mxu0 0.0
        %614 = vmatprep.subr.mxu0 0.0
        %615 = vmatpush1.msra.mxu0 0.0
        %616 = vmatprep.subr.mxu0 0.0
        %617 = vmatpush1.msra.mxu0 0.0
        %618 = vmatprep.subr.mxu0 0.0
        %619 = vmatpush1.msra.mxu0 0.0
        %620 = vmatprep.subr.mxu0 0.0
        %621 = vmatpush1.msra.mxu0 0.0
        %622 = vmatprep.subr.mxu0 0.0
        %623 = vmatpush1.msra.mxu0 0.0
        %624 = vmatprep.subr.mxu0 0.0
        %625 = vmatpush1.msra.mxu0 0.0
        %626 = vmatprep.subr.mxu0 0.0
        %627 = vmatpush1.msra.mxu0 0.0
        %628 = vmatprep.subr.mxu0 0.0
        %629 = vmatpush1.msra.mxu0 0.0
        %630 = vmatprep.subr.mxu0 0.0
        %631 = vmatpush1.msra.mxu0 0.0
        %632 = vmatprep.subr.mxu0 0.0
        %633 = vmatpush1.msra.mxu0 0.0
        %634 = vmatprep.subr.mxu0 0.0
        %635 = vmatpush1.msra.mxu0 0.0
        %636 = vmatprep.subr.mxu0 0.0
        %637 = vmatpush1.msra.mxu0 0.0
        %638 = vmatprep.subr.mxu0 0.0
        %639 = vmatpush1.msra.mxu0 0.0
        %640 = vmatprep.subr.mxu0 0.0
        %641 = vmatpush1.msra.mxu0 0.0
        %642 = vmatprep.subr.mxu0 0.0
        %643 = vmatpush1.msra.mxu0 0.0
        %644 = vmatprep.subr.mxu0 0.0
        %645 = vmatpush1.msra.mxu0 0.0
        %646 = vmatprep.subr.mxu0 0.0
        %647 = vmatpush1.msra.mxu0 0.0
        %648 = vmatprep.subr.mxu0 0.0
        %649 = vmatpush1.msra.mxu0 0.0
        %650 = vmatprep.subr.mxu0 0.0
        %651 = vmatpush1.msra.mxu0 0.0
        %652 = vmatprep.subr.mxu0 0.0
        %653 = vmatpush1.msra.mxu0 0.0
        %654 = vmatprep.subr.mxu0 0.0
        %655 = vmatpush1.msra.mxu0 0.0
        %656 = vmatprep.subr.mxu0 0.0
        %657 = vmatpush1.msra.mxu0 0.0
        %658 = vmatprep.subr.mxu0 0.0
        %659 = vmatpush1.msra.mxu0 0.0
        %660 = vmatprep.subr.mxu0 0.0
        %661 = vmatpush1.msra.mxu0 0.0
        %662 = vmatprep.subr.mxu0 0.0
        %663 = vmatpush1.msra.mxu0 0.0
        %664 = vmatprep.mubr.f32.mxu0 0.0
        %665 = vmatmul.mubr.f32.gmra.mrb[0].mxu0 %v589
        %v666 = vpop.f32.mrb[0].mxu0
        %v667 = vadd.f32 %v574, %v666
        %v668 = vpop.f32.mrb[0].mxu0
        %669 = vmatprep.mubr.f32.mxu0 0.0
        %670 = vmatmul.mubr.f32.gmra.mrb[0].mxu0 %v592
        %v671 = vpop.f32.mrb[0].mxu0
        %v672 = vadd.f32 %v578, %v671
        %v673 = vpop.f32.mrb[0].mxu0
        %674 = vmatprep.mubr.f32.mxu0 0.0
        %675 = vmatmul.mubr.f32.gmra.mrb[0].mxu0 %v595
        %v676 = vpop.f32.mrb[0].mxu0
        %v677 = vadd.f32 %v582, %v676
        %v678 = vpop.f32.mrb[0].mxu0
        %679 = vmatprep.mubr.f32.mxu0 0.0
        %680 = vmatmul.mubr.f32.gmra.mrb[0].mxu0 %v598
        %v681 = vpop.f32.mrb[0].mxu0
        %v682 = vadd.f32 %v586, %v681
        %v683 = vpop.f32.mrb[0].mxu0
        %684 = vdwg.mxu0
        %v685 = vmax.f32 %v667, 0.0
        %v686 = vmax.f32 %v672, 0.0
        %v687 = vmax.f32 %v677, 0.0
        %v688 = vmax.f32 %v682, 0.0
        %v689 = vld [vmem:[%s3] sm:$0x7]
        %v690 = vld [vmem:[%s5] sm:$0x7]
        %692 = vset.pattern.permute.xlu0 0
        %693 = vperm.xlu0 %692, %v690
        %v694 = vpop.permute.xlu0 %693
        %v697 = vsel %vm466, %v689, 0
        %699 = vmatprep.subr.mxu0 0.0
        %700 = vmatpush1.msra.mxu0 %v685
        %701 = vmatprep.subr.mxu0 0.0
        %702 = vmatpush1.msra.mxu0 %v686
        %703 = vmatprep.subr.mxu0 0.0
        %704 = vmatpush1.msra.mxu0 %v687
        %705 = vmatprep.subr.mxu0 0.0
        %706 = vmatpush1.msra.mxu0 %v688
        %707 = vmatprep.subr.mxu0 0.0
        %708 = vmatpush1.msra.mxu0 0.0
        %709 = vmatprep.subr.mxu0 0.0
        %710 = vmatpush1.msra.mxu0 0.0
        %711 = vmatprep.subr.mxu0 0.0
        %712 = vmatpush1.msra.mxu0 0.0
        %713 = vmatprep.subr.mxu0 0.0
        %714 = vmatpush1.msra.mxu0 0.0
        %715 = vmatprep.subr.mxu0 0.0
        %716 = vmatpush1.msra.mxu0 0.0
        %717 = vmatprep.subr.mxu0 0.0
        %718 = vmatpush1.msra.mxu0 0.0
        %719 = vmatprep.subr.mxu0 0.0
        %720 = vmatpush1.msra.mxu0 0.0
        %721 = vmatprep.subr.mxu0 0.0
        %722 = vmatpush1.msra.mxu0 0.0
        %723 = vmatprep.subr.mxu0 0.0
        %724 = vmatpush1.msra.mxu0 0.0
        %725 = vmatprep.subr.mxu0 0.0
        %726 = vmatpush1.msra.mxu0 0.0
        %727 = vmatprep.subr.mxu0 0.0
        %728 = vmatpush1.msra.mxu0 0.0
        %729 = vmatprep.subr.mxu0 0.0
        %730 = vmatpush1.msra.mxu0 0.0
        %731 = vmatprep.subr.mxu0 0.0
        %732 = vmatpush1.msra.mxu0 0.0
        %733 = vmatprep.subr.mxu0 0.0
        %734 = vmatpush1.msra.mxu0 0.0
        %735 = vmatprep.subr.mxu0 0.0
        %736 = vmatpush1.msra.mxu0 0.0
        %737 = vmatprep.subr.mxu0 0.0
        %738 = vmatpush1.msra.mxu0 0.0
        %739 = vmatprep.subr.mxu0 0.0
        %740 = vmatpush1.msra.mxu0 0.0
        %741 = vmatprep.subr.mxu0 0.0
        %742 = vmatpush1.msra.mxu0 0.0
        %743 = vmatprep.subr.mxu0 0.0
        %744 = vmatpush1.msra.mxu0 0.0
        %745 = vmatprep.subr.mxu0 0.0
        %746 = vmatpush1.msra.mxu0 0.0
        %747 = vmatprep.subr.mxu0 0.0
        %748 = vmatpush1.msra.mxu0 0.0
        %749 = vmatprep.subr.mxu0 0.0
        %750 = vmatpush1.msra.mxu0 0.0
        %751 = vmatprep.subr.mxu0 0.0
        %752 = vmatpush1.msra.mxu0 0.0
        %753 = vmatprep.subr.mxu0 0.0
        %754 = vmatpush1.msra.mxu0 0.0
        %755 = vmatprep.subr.mxu0 0.0
        %756 = vmatpush1.msra.mxu0 0.0
        %757 = vmatprep.subr.mxu0 0.0
        %758 = vmatpush1.msra.mxu0 0.0
        %759 = vmatprep.subr.mxu0 0.0
        %760 = vmatpush1.msra.mxu0 0.0
        %761 = vmatprep.subr.mxu0 0.0
        %762 = vmatpush1.msra.mxu0 0.0
        %763 = vmatprep.mubr.f32.mxu0 0.0
        %764 = vmatmul.mubr.f32.gmra.mrb[0].mxu0 %v697
        %v765 = vpop.f32.mrb[0].mxu0
        %v766 = vadd.f32 %v694, %v765
        %v767 = vpop.f32.mrb[0].mxu0
        %768 = vdwg.mxu0
        %v769 = vxor.u32 %v766, 2147483648
        %v770 = vmul.f32 %v769, 1.442695
        %v771 = vpow.pop %v770
        %v772 = vadd.f32 %v771, 1.0
        %v773 = vrcp.pop %v772
        %v774 = vmul.f32 1.0, %v773
        %775 = vst [vmem:[%s245] sm:$0x7] %v774
        %s776 = sand.u32 %s159, 1
        %s777 = scalar_lea.sflag [#allocation3], %s776
        %s778 = sand.u32 %s159, 1
        %s779 = smul.addr %s778, 4
        %s780 = scalar_lea.vmem [#allocation2], %s779
        // Predicated region
        $region45: #{tpu_custom_call.1} parent=43 // pred_check
          %p781 = pneg %p169
        $region46: #{tpu_custom_call.1} parent=43 // pred_check_branch
          %783 = sbr.rel (%p781) target = $region48
        $region47: #{tpu_custom_call.1} parent=43 // pred_region
          %s785 = ssub.s32 64, 64
          %786 = vsyncadd %s777, %s785
          %s787 = smul.addr %s20, 64
          %s788 = scalar_lea.hbm %s6, %s787
          %s790 = sshll.u32 %s780, 4
          %s791 = int_to_ptr.vmem [resolvable:$true] %s790
          %793 = dma.vmem_to_hbm [thread:$0]  %s791, 64, %s788, %s777
        $region48: #{tpu_custom_call.1} parent=43 // pred_fallthru
          _
      $region44: #{tpu_custom_call.1} parent=5 // pred_fallthru
        _
      %p794 = scmp.le.s32.totalorder 2, %s15
      // Predicated region
      $region49: #{tpu_custom_call.1} parent=5 // pred_check
        %p795 = pneg %p794
      $region50: #{tpu_custom_call.1} parent=5 // pred_check_branch
        %797 = sbr.rel (%p795) target = $region52
      $region51: #{tpu_custom_call.1} parent=5 // pred_region
        %s798 = ssub.s32 %s15, 2
        // Predicated region
        $region53: #{tpu_custom_call.1} parent=51 // pred_check
          %p799 = pneg %p175
        $region54: #{tpu_custom_call.1} parent=51 // pred_check_branch
          %801 = sbr.rel (%p799) target = $region56
        $region55: #{tpu_custom_call.1} parent=51 // pred_region
          %s802 = sand.u32 %s160, 1
          %s803 = scalar_lea.sflag [#allocation3], %s802
          %s804 = sand.u32 %s160, 1
          %s805 = smul.addr %s804, 4
          %s806 = scalar_lea.vmem [#allocation2], %s805
          %807 = dma.done %s803, 64
        $region56: #{tpu_custom_call.1} parent=51 // pred_fallthru
          _
      $region52: #{tpu_custom_call.1} parent=5 // pred_fallthru
        _
    $region6: #{tpu_custom_call.1} parent=1 // loop_footer
      %s19 = sadd.s32 1, %s15
    $region7: #{tpu_custom_call.1} parent=1 // loop_footer_branch
      %14 = sbr.rel target = $region3
    $region8: #{tpu_custom_call.1} parent=1 // loop_exit
      _
    %808 = vsyncpa [#allocation3], 1
    %s809 = scalar_lea.sflag [#allocation3], 1
    %810 = vsyncpa %s809, 1

</llo_original>
